<compile_context>
chip_gen: v7x
topology: tpu7x:2x2x1
jax: 0.10.0
libtpu: 0.0.40
codegen_flags: <defaults>
</compile_context>

<pallas_src>
import functools

import jax
import jax.numpy as jnp
import numpy as np
from jax.experimental import pallas as pl
from jax.experimental.pallas import tpu as pltpu


def _ensemble_kernel(x_ref, y_ref, wx_ref, wy_ref, out_ref, *, normalize_logits):
    """out = w_x * f(x) + w_y * f(y), f = log_softmax (normalize) or identity."""
    x = x_ref[...].astype(jnp.float32)          # (TR, Cp)
    y = y_ref[...].astype(jnp.float32)          # (TR, Cp)
    wx = wx_ref[...].astype(jnp.float32)        # (1, Cp) -> broadcast over rows
    wy = wy_ref[...].astype(jnp.float32)

    if normalize_logits:
        # Numerically-stable log_softmax along the class (lane) axis.
        # Subtract log-sum-exp instead of dividing by the sum: only one exp and
        # one log per operand hit the single EUP slot.
        x = x - jnp.max(x, axis=-1, keepdims=True)
        x = x - jnp.log(jnp.sum(jnp.exp(x), axis=-1, keepdims=True))
        y = y - jnp.max(y, axis=-1, keepdims=True)
        y = y - jnp.log(jnp.sum(jnp.exp(y), axis=-1, keepdims=True))

    out_ref[...] = (x * wx + y * wy).astype(out_ref.dtype)


def pooling_clip_head_ensemble(pred_open_logits, mask_pred_open_logits,
                               category_overlapping_mask, *, alpha=0.35,
                               beta=0.65, normalize_logits=True,
                               block_rows=256):
    """Pallas implementation of PoolingCLIPHead.forward's logit combination."""
    B, Q, C = pred_open_logits.shape
    assert mask_pred_open_logits.shape == (B, Q, C)
    dtype = pred_open_logits.dtype

    m = category_overlapping_mask.astype(jnp.float32)
    if normalize_logits:
        # log(p^(1-a) q^a)*m + log(p^(1-b) q^b)*(1-m)
        #   == [(1-a)m + (1-b)(1-m)] * log_softmax(x) + [a m + b (1-m)] * log_softmax(y)
        w_x = (1.0 - alpha) * m + (1.0 - beta) * (1.0 - m)
        w_y = alpha * m + beta * (1.0 - m)
    else:
        # Matches the PyTorch expression exactly (mask multiplies only the
        # MaskCLIP term):  base = x*(1-a) + y*a*m ; novel = x*(1-b) + y*b*(1-m)
        w_x = jnp.full((C,), (1.0 - alpha) + (1.0 - beta), dtype=jnp.float32)
        w_y = alpha * m + beta * (1.0 - m)

    # ---- flatten to rows, pad class axis to a lane-dense multiple of 128 ----
    R = B * Q
    x = pred_open_logits.reshape(R, C)
    y = mask_pred_open_logits.reshape(R, C)

    Cp = max(128, ((C + 127) // 128) * 128)
    if Cp != C:
        if jnp.issubdtype(dtype, jnp.floating):
            neg = float(jnp.finfo(dtype).min) / 2.0  # large-negative, finite
        else:
            neg = -1e30
        x = jnp.pad(x, ((0, 0), (0, Cp - C)), constant_values=neg)
        y = jnp.pad(y, ((0, 0), (0, Cp - C)), constant_values=neg)
        w_x = jnp.pad(w_x, (0, Cp - C))          # zero weight on padded classes
        w_y = jnp.pad(w_y, (0, Cp - C))
    w_x = w_x.reshape(1, Cp)
    w_y = w_y.reshape(1, Cp)

    # ---- row tile: multiple of 8 sublanes, capped by a conservative VMEM budget
    # (2 inputs + 1 output, double-buffered, f32) so large open-vocab C still fits
    # the v7x 32 MiB scoped default. ----
    bytes_per_row = Cp * 4
    budget_tr = max(8, ((24 * 1024 * 1024) // (6 * bytes_per_row)) // 8 * 8)
    tr = min(int(block_rows), budget_tr, ((R + 7) // 8) * 8)
    tr = max(8, (tr // 8) * 8)
    Rp = ((R + tr - 1) // tr) * tr
    if Rp != R:
        x = jnp.pad(x, ((0, Rp - R), (0, 0)))
        y = jnp.pad(y, ((0, Rp - R), (0, 0)))

    kernel = functools.partial(_ensemble_kernel,
                               normalize_logits=bool(normalize_logits))

    out = pl.pallas_call(
        kernel,
        out_shape=jax.ShapeDtypeStruct((Rp, Cp), dtype),
        grid_spec=pltpu.PrefetchScalarGridSpec(
            num_scalar_prefetch=0,
            grid=(Rp // tr,),
            in_specs=[
                pl.BlockSpec((tr, Cp), lambda i: (i, 0)),
                pl.BlockSpec((tr, Cp), lambda i: (i, 0)),
                pl.BlockSpec((1, Cp), lambda i: (0, 0)),
                pl.BlockSpec((1, Cp), lambda i: (0, 0)),
            ],
            out_specs=pl.BlockSpec((tr, Cp), lambda i: (i, 0)),
        ),
        compiler_params=pltpu.CompilerParams(
            dimension_semantics=("parallel",)),
    )(x, y, w_x, w_y)

    return out[:R, :C].reshape(B, Q, C)


def _reference(pred_open_logits, mask_pred_open_logits, cat_mask, alpha, beta,
               normalize_logits):
    """Direct transcription of the PyTorch forward's logit combination."""
    m = cat_mask.astype(jnp.float32)
    x = pred_open_logits.astype(jnp.float32)
    y = mask_pred_open_logits.astype(jnp.float32)
    if normalize_logits:
        p = jax.nn.softmax(x, axis=-1)
        q = jax.nn.softmax(y, axis=-1)
        base = jnp.log(p ** (1 - alpha) * q ** alpha) * m
        novel = jnp.log(p ** (1 - beta) * q ** beta) * (1 - m)
    else:
        base = x * (1 - alpha) + y * alpha * m
        novel = x * (1 - beta) + y * beta * (1 - m)
    return base + novel


if __name__ == "__main__":
    # Small, deterministic synthetic shapes: batch=2, queries=16, test classes=16.
    key = jax.random.PRNGKey(0)
    k1, k2, k3 = jax.random.split(key, 3)

    B, Q, C = 2, 16, 16
    pred_open_logits = jax.random.normal(k1, (B, Q, C), dtype=jnp.float32)
    # TODO(synk): the MaskCLIP backbone, CLIP text embedding and NLTK label
    # prompting are external models / non-tensor string processing, not part of
    # this module's tensor math; they are modelled here as synthetic inputs.
    mask_pred_open_logits = jax.random.normal(k2, (B, Q, C), dtype=jnp.float32)
    # category_overlapping_mask: normally derived from string-set intersection
    # of train/test label vocabularies (no tensor compute); synthesized as 0/1.
    category_overlapping_mask = (
        jax.random.uniform(k3, (C,)) > 0.5).astype(jnp.int32)

    for norm in (True, False):
        out = pooling_clip_head_ensemble(
            pred_open_logits, mask_pred_open_logits, category_overlapping_mask,
            alpha=0.35, beta=0.65, normalize_logits=norm)
        out = jax.block_until_ready(out)
        ref = _reference(pred_open_logits, mask_pred_open_logits,
                         category_overlapping_mask, 0.35, 0.65, norm)
        np.testing.assert_allclose(np.asarray(out), np.asarray(ref),
                                   rtol=1e-5, atol=1e-5)

    print("KERNEL_OK")
</pallas_src>

<mosaic_0001>
module attributes {stable_mosaic.version = 11 : i64} {
  func.func @_ensemble_kernel(%arg0: i32, %arg1: memref<32x128xf32, #tpu.memory_space<vmem>>, %arg2: memref<32x128xf32, #tpu.memory_space<vmem>>, %arg3: memref<1x128xf32, #tpu.memory_space<vmem>>, %arg4: memref<1x128xf32, #tpu.memory_space<vmem>>, %arg5: memref<32x128xf32, #tpu.memory_space<vmem>>) attributes {dimension_semantics = [#tpu.dimension_semantics<parallel>], iteration_bounds = array<i64: 1>, scalar_prefetch = 0 : i64, scratch_operands = 0 : i64, tpu.core_type = #tpu.core_type<tc>, window_params = [{transform_indices = @transform_0, window_bounds = array<i64: 32, 128>}, {transform_indices = @transform_1, window_bounds = array<i64: 32, 128>}, {pipeline_mode = #tpu.pipeline_mode<synchronous>, transform_indices = @transform_2, window_bounds = array<i64: 1, 128>}, {pipeline_mode = #tpu.pipeline_mode<synchronous>, transform_indices = @transform_3, window_bounds = array<i64: 1, 128>}, {transform_indices = @transform_4, window_bounds = array<i64: 32, 128>}]} {
    %c0 = arith.constant 0 : index
    %c0_0 = arith.constant 0 : index
    %0 = vector.load %arg1[%c0, %c0_0] : memref<32x128xf32, #tpu.memory_space<vmem>>, vector<32x128xf32>
    %c0_1 = arith.constant 0 : index
    %c0_2 = arith.constant 0 : index
    %1 = vector.load %arg2[%c0_1, %c0_2] : memref<32x128xf32, #tpu.memory_space<vmem>>, vector<32x128xf32>
    %c0_3 = arith.constant 0 : index
    %c0_4 = arith.constant 0 : index
    %2 = vector.load %arg3[%c0_3, %c0_4] : memref<1x128xf32, #tpu.memory_space<vmem>>, vector<1x128xf32>
    %c0_5 = arith.constant 0 : index
    %c0_6 = arith.constant 0 : index
    %3 = vector.load %arg4[%c0_5, %c0_6] : memref<1x128xf32, #tpu.memory_space<vmem>>, vector<1x128xf32>
    %cst = arith.constant dense<0xFF800000> : vector<32xf32>
    %4 = vector.multi_reduction <maximumf>, %0, %cst [1] : vector<32x128xf32> to vector<32xf32>
    %5 = vector.shape_cast %4 : vector<32xf32> to vector<32x1xf32>
    %6 = vector.broadcast %5 : vector<32x1xf32> to vector<32x128xf32>
    %7 = arith.subf %0, %6 : vector<32x128xf32>
    %8 = math.exp %7 : vector<32x128xf32>
    %cst_7 = arith.constant dense<0.000000e+00> : vector<32xf32>
    %9 = vector.multi_reduction <add>, %8, %cst_7 [1] : vector<32x128xf32> to vector<32xf32>
    %10 = vector.shape_cast %9 : vector<32xf32> to vector<32x1xf32>
    %11 = math.log %10 : vector<32x1xf32>
    %12 = vector.broadcast %11 : vector<32x1xf32> to vector<32x128xf32>
    %13 = arith.subf %7, %12 : vector<32x128xf32>
    %cst_8 = arith.constant dense<0xFF800000> : vector<32xf32>
    %14 = vector.multi_reduction <maximumf>, %1, %cst_8 [1] : vector<32x128xf32> to vector<32xf32>
    %15 = vector.shape_cast %14 : vector<32xf32> to vector<32x1xf32>
    %16 = vector.broadcast %15 : vector<32x1xf32> to vector<32x128xf32>
    %17 = arith.subf %1, %16 : vector<32x128xf32>
    %18 = math.exp %17 : vector<32x128xf32>
    %cst_9 = arith.constant dense<0.000000e+00> : vector<32xf32>
    %19 = vector.multi_reduction <add>, %18, %cst_9 [1] : vector<32x128xf32> to vector<32xf32>
    %20 = vector.shape_cast %19 : vector<32xf32> to vector<32x1xf32>
    %21 = math.log %20 : vector<32x1xf32>
    %22 = vector.broadcast %21 : vector<32x1xf32> to vector<32x128xf32>
    %23 = arith.subf %17, %22 : vector<32x128xf32>
    %24 = vector.broadcast %2 : vector<1x128xf32> to vector<32x128xf32>
    %25 = arith.mulf %13, %24 : vector<32x128xf32>
    %26 = vector.broadcast %3 : vector<1x128xf32> to vector<32x128xf32>
    %27 = arith.mulf %23, %26 : vector<32x128xf32>
    %28 = arith.addf %25, %27 : vector<32x128xf32>
    %c0_10 = arith.constant 0 : index
    %c0_11 = arith.constant 0 : index
    %29 = vector.load %arg5[%c0_10, %c0_11] : memref<32x128xf32, #tpu.memory_space<vmem>>, vector<32x128xf32>
    tpu.vector_store %arg5[%c0_10, %c0_11], %28 {strides = array<i32>} : memref<32x128xf32, #tpu.memory_space<vmem>>, vector<32x128xf32>,
    return
  }
  func.func @transform_0(%arg0: i32) -> (i32, i32) {
    %c0_i32 = arith.constant 0 : i32
    %c0_i32_0 = arith.constant 0 : i32
    return %arg0, %c0_i32 : i32, i32
  }
  func.func @transform_1(%arg0: i32) -> (i32, i32) {
    %c0_i32 = arith.constant 0 : i32
    %c0_i32_0 = arith.constant 0 : i32
    return %arg0, %c0_i32 : i32, i32
  }
  func.func @transform_2(%arg0: i32) -> (i32, i32) {
    %c0_i32 = arith.constant 0 : i32
    %c0_i32_0 = arith.constant 0 : i32
    %c0_i32_1 = arith.constant 0 : i32
    return %c0_i32, %c0_i32_0 : i32, i32
  }
  func.func @transform_3(%arg0: i32) -> (i32, i32) {
    %c0_i32 = arith.constant 0 : i32
    %c0_i32_0 = arith.constant 0 : i32
    %c0_i32_1 = arith.constant 0 : i32
    return %c0_i32, %c0_i32_0 : i32, i32
  }
  func.func @transform_4(%arg0: i32) -> (i32, i32) {
    %c0_i32 = arith.constant 0 : i32
    %c0_i32_0 = arith.constant 0 : i32
    return %arg0, %c0_i32 : i32, i32
  }
}

</mosaic_0001>

<llo_original>
// kernel: tpu_custom_call.1
$region0: #{tpu_custom_call.1}
  #allocation0 [shape = 'u32[]', space=smem, size = 0x4, offset = 0x4, fixed_abs, tag = 'smem constant byte address 0x4 - core index']
  #allocation1 [shape = 'u32[144,128]{1,0:T(1,128)}', space=vmem, size = 0x12000, scoped, tag = 'internal scratch']
  %s0 = inlined_call_operand.hbm [shape: f32[32,128], index: 0, kind: input, shape index: {}]
  %s1 = inlined_call_operand.hbm [shape: f32[32,128], index: 1, kind: input, shape index: {}]
  %s2 = inlined_call_operand.vmem [shape: f32[1,128], index: 2, kind: input, shape index: {}]
  %s3 = inlined_call_operand.vmem [shape: f32[1,128], index: 3, kind: input, shape index: {}]
  %s4 = inlined_call_operand.hbm [shape: f32[32,128], index: 4, kind: output, shape index: {}]
  %s5 = sld [smem:[#allocation0]]
  $region34: #{tpu_custom_call.1} parent=0
    _
  %s7 = ssub.s32 1, %s5
  %s8 = scalar_select 0, %s7, %s5
  $region1: #{tpu_custom_call.1} parent=0
    #allocation2 [shape = 'u8[16384]{0}', space=vmem, size = 0x4000, scoped, tag = 'input window, operand 0, single buffered']
    #allocation3 [shape = 's32[1]{0}', space=sflag, size = 0x4, scoped, tag = 'scoped memory for tpu_custom_call.1']
    #allocation4 [shape = 's32[1]{0}', space=sflag, size = 0x4, scoped, tag = 'scoped memory for tpu_custom_call.1']
    #allocation5 [shape = 'u8[16384]{0}', space=vmem, size = 0x4000, scoped, tag = 'input window, operand 1, single buffered']
    #allocation6 [shape = 's32[1]{0}', space=sflag, size = 0x4, scoped, tag = 'scoped memory for tpu_custom_call.1']
    #allocation7 [shape = 'u8[16384]{0}', space=vmem, size = 0x4000, scoped, tag = 'output window, operand 0, single buffered']
    %9 = vsyncpa [#allocation3], 0
    %10 = vsyncpa [#allocation6], 0
    %11 = vsyncpa [#allocation4], 0
    // Predicated region
    $region2: #{tpu_custom_call.1} parent=1 // pred_check
      _
    $region3: #{tpu_custom_call.1} parent=1 // pred_check_branch
      %13 = sbr.rel (0) target = $region5
    $region4: #{tpu_custom_call.1} parent=1 // pred_region
      %s15 = ssub.s32 512, 512
      %16 = vsyncadd [#allocation3], %s15
      %s17 = sshll.u32 [#allocation2], 4
      %s18 = int_to_ptr.vmem [resolvable:$true] %s17
      %23 = dma.hbm_to_vmem [thread:$0]  %s0, 512, %s18, [#allocation3], 128, 128, 8
    $region5: #{tpu_custom_call.1} parent=1 // pred_fallthru
      _
    // Predicated region
    $region6: #{tpu_custom_call.1} parent=1 // pred_check
      _
    $region7: #{tpu_custom_call.1} parent=1 // pred_check_branch
      %25 = sbr.rel (0) target = $region9
    $region8: #{tpu_custom_call.1} parent=1 // pred_region
      %s27 = ssub.s32 512, 512
      %28 = vsyncadd [#allocation6], %s27
      %s29 = sshll.u32 [#allocation5], 4
      %s30 = int_to_ptr.vmem [resolvable:$true] %s29
      %35 = dma.hbm_to_vmem [thread:$0]  %s1, 512, %s30, [#allocation6], 128, 128, 8
    $region9: #{tpu_custom_call.1} parent=1 // pred_fallthru
      _
    // Predicated region
    $region10: #{tpu_custom_call.1} parent=1 // pred_check
      _
    $region11: #{tpu_custom_call.1} parent=1 // pred_check_branch
      %37 = sbr.rel (0) target = $region13
    $region12: #{tpu_custom_call.1} parent=1 // pred_region
      _
    $region13: #{tpu_custom_call.1} parent=1 // pred_fallthru
      _
    // Predicated region
    $region14: #{tpu_custom_call.1} parent=1 // pred_check
      _
    $region15: #{tpu_custom_call.1} parent=1 // pred_check_branch
      %39 = sbr.rel (0) target = $region17
    $region16: #{tpu_custom_call.1} parent=1 // pred_region
      _
    $region17: #{tpu_custom_call.1} parent=1 // pred_fallthru
      _
    // Predicated region
    $region18: #{tpu_custom_call.1} parent=1 // pred_check
      _
    $region19: #{tpu_custom_call.1} parent=1 // pred_check_branch
      %41 = sbr.rel (0) target = $region21
    $region20: #{tpu_custom_call.1} parent=1 // pred_region
      %42 = dma.done [#allocation3], 512
    $region21: #{tpu_custom_call.1} parent=1 // pred_fallthru
      _
    // Predicated region
    $region22: #{tpu_custom_call.1} parent=1 // pred_check
      _
    $region23: #{tpu_custom_call.1} parent=1 // pred_check_branch
      %44 = sbr.rel (0) target = $region25
    $region24: #{tpu_custom_call.1} parent=1 // pred_region
      %45 = dma.done [#allocation6], 512
    $region25: #{tpu_custom_call.1} parent=1 // pred_fallthru
      _
    %v46 = vld [vmem:[#allocation2] sm:$0xff]
    %v47 = vld [vmem:[#allocation2 + $0x8] sm:$0xff]
    %v48 = vld [vmem:[#allocation2 + $0x10] sm:$0xff]
    %v49 = vld [vmem:[#allocation2 + $0x18] sm:$0xff]
    %v50 = vld [vmem:[#allocation5] sm:$0xff]
    %v51 = vld [vmem:[#allocation5 + $0x8] sm:$0xff]
    %v52 = vld [vmem:[#allocation5 + $0x10] sm:$0xff]
    %v53 = vld [vmem:[#allocation5 + $0x18] sm:$0xff]
    %v54 = vld [vmem:[%s2] sm:$0x1]
    %v55 = vld [vmem:[%s3] sm:$0x1]
    %56 = vmax.xlane.f32.xlu0 %v46
    %v57 = vpop.xlane.xlu0 %56
    %58 = vmax.xlane.f32.xlu0 %v47
    %v59 = vpop.xlane.xlu0 %58
    %60 = vmax.xlane.f32.xlu0 %v48
    %v61 = vpop.xlane.xlu0 %60
    %62 = vmax.xlane.f32.xlu0 %v49
    %v63 = vpop.xlane.xlu0 %62
    %v64 = vsub.f32 %v46, %v57
    %v65 = vsub.f32 %v47, %v59
    %v66 = vsub.f32 %v48, %v61
    %v67 = vsub.f32 %v49, %v63
    %v68 = vmul.f32 %v64, 1.442695
    %v69 = vpow.pop %v68
    %v70 = vmul.f32 %v65, 1.442695
    %v71 = vpow.pop %v70
    %v72 = vmul.f32 %v66, 1.442695
    %v73 = vpow.pop %v72
    %v74 = vmul.f32 %v67, 1.442695
    %v75 = vpow.pop %v74
    %76 = vadd.xlane.f32.xlu0 %v69
    %v77 = vpop.xlane.xlu0 %76
    %78 = vadd.xlane.f32.xlu0 %v71
    %v79 = vpop.xlane.xlu0 %78
    %80 = vadd.xlane.f32.xlu0 %v73
    %v81 = vpop.xlane.xlu0 %80
    %82 = vadd.xlane.f32.xlu0 %v75
    %v83 = vpop.xlane.xlu0 %82
    %v84 = vlog2.pop %v77
    %v85 = vmul.f32 %v84, 0.6931472
    %v86 = vlog2.pop %v79
    %v87 = vmul.f32 %v86, 0.6931472
    %v88 = vlog2.pop %v81
    %v89 = vmul.f32 %v88, 0.6931472
    %v90 = vlog2.pop %v83
    %v91 = vmul.f32 %v90, 0.6931472
    %v92 = vsub.f32 %v64, %v85
    %v93 = vsub.f32 %v65, %v87
    %v94 = vsub.f32 %v66, %v89
    %v95 = vsub.f32 %v67, %v91
    %96 = vmax.xlane.f32.xlu0 %v50
    %v97 = vpop.xlane.xlu0 %96
    %98 = vmax.xlane.f32.xlu0 %v51
    %v99 = vpop.xlane.xlu0 %98
    %100 = vmax.xlane.f32.xlu0 %v52
    %v101 = vpop.xlane.xlu0 %100
    %102 = vmax.xlane.f32.xlu0 %v53
    %v103 = vpop.xlane.xlu0 %102
    %v104 = vsub.f32 %v50, %v97
    %v105 = vsub.f32 %v51, %v99
    %v106 = vsub.f32 %v52, %v101
    %v107 = vsub.f32 %v53, %v103
    %v108 = vmul.f32 %v104, 1.442695
    %v109 = vpow.pop %v108
    %v110 = vmul.f32 %v105, 1.442695
    %v111 = vpow.pop %v110
    %v112 = vmul.f32 %v106, 1.442695
    %v113 = vpow.pop %v112
    %v114 = vmul.f32 %v107, 1.442695
    %v115 = vpow.pop %v114
    %116 = vadd.xlane.f32.xlu0 %v109
    %v117 = vpop.xlane.xlu0 %116
    %118 = vadd.xlane.f32.xlu0 %v111
    %v119 = vpop.xlane.xlu0 %118
    %120 = vadd.xlane.f32.xlu0 %v113
    %v121 = vpop.xlane.xlu0 %120
    %122 = vadd.xlane.f32.xlu0 %v115
    %v123 = vpop.xlane.xlu0 %122
    %v124 = vlog2.pop %v117
    %v125 = vmul.f32 %v124, 0.6931472
    %v126 = vlog2.pop %v119
    %v127 = vmul.f32 %v126, 0.6931472
    %v128 = vlog2.pop %v121
    %v129 = vmul.f32 %v128, 0.6931472
    %v130 = vlog2.pop %v123
    %v131 = vmul.f32 %v130, 0.6931472
    %v132 = vsub.f32 %v104, %v125
    %v133 = vsub.f32 %v105, %v127
    %v134 = vsub.f32 %v106, %v129
    %v135 = vsub.f32 %v107, %v131
    %v137 = vlaneseq
    %v138 = vshrl.u32 %v137, 7
    %v139 = vsub.s32 0, %v138
    %v140 = vrot.slane %v54, %v139
    %v142 = vmul.f32 %v92, %v140
    %v143 = vmul.f32 %v93, %v140
    %v144 = vmul.f32 %v94, %v140
    %v145 = vmul.f32 %v95, %v140
    %v147 = vlaneseq
    %v148 = vshrl.u32 %v147, 7
    %v149 = vsub.s32 0, %v148
    %v150 = vrot.slane %v55, %v149
    %v152 = vmul.f32 %v132, %v150
    %v153 = vmul.f32 %v133, %v150
    %v154 = vmul.f32 %v134, %v150
    %v155 = vmul.f32 %v135, %v150
    %v156 = vadd.f32 %v142, %v152
    %v157 = vadd.f32 %v143, %v153
    %v158 = vadd.f32 %v144, %v154
    %v159 = vadd.f32 %v145, %v155
    %160 = vst [vmem:[#allocation7] sm:$0xff] %v156
    %161 = vst [vmem:[#allocation7 + $0x8] sm:$0xff] %v157
    %162 = vst [vmem:[#allocation7 + $0x10] sm:$0xff] %v158
    %163 = vst [vmem:[#allocation7 + $0x18] sm:$0xff] %v159
    // Predicated region
    $region26: #{tpu_custom_call.1} parent=1 // pred_check
      _
    $region27: #{tpu_custom_call.1} parent=1 // pred_check_branch
      %165 = sbr.rel (0) target = $region29
    $region28: #{tpu_custom_call.1} parent=1 // pred_region
      %s167 = ssub.s32 512, 512
      %168 = vsyncadd [#allocation4], %s167
      %s169 = sshll.u32 [#allocation7], 4
      %s170 = int_to_ptr.vmem [resolvable:$true] %s169
      %175 = dma.vmem_to_hbm [thread:$0]  %s170, 512, %s4, [#allocation4], 128, 128, 8
    $region29: #{tpu_custom_call.1} parent=1 // pred_fallthru
      _
    // Predicated region
    $region30: #{tpu_custom_call.1} parent=1 // pred_check
      _
    $region31: #{tpu_custom_call.1} parent=1 // pred_check_branch
      %177 = sbr.rel (0) target = $region33
    $region32: #{tpu_custom_call.1} parent=1 // pred_region
      %178 = dma.done [#allocation4], 512
    $region33: #{tpu_custom_call.1} parent=1 // pred_fallthru
      _
    %179 = vsyncpa [#allocation3], 1
    %180 = vsyncpa [#allocation6], 1
    %181 = vsyncpa [#allocation4], 1

</llo_original>
